<compile_context>
chip_gen: v6e
topology: v6e:2x2x1
jax: 0.10.0
libtpu: 0.0.40
codegen_flags: <defaults>
</compile_context>

<pallas_src>
import math
import functools

import jax
import jax.numpy as jnp
from jax import lax
from jax.experimental import pallas as pl
from jax.experimental.pallas import tpu as pltpu


# ---------------------------------------------------------------------------
# Buffer construction (deterministic, matches the PyTorch __init__; d_model even)
# ---------------------------------------------------------------------------
def make_positional_encoding(d_model: int, max_len: int) -> jnp.ndarray:
    """Returns pe of shape (max_len, d_model); the torch buffer's singleton batch
    axis is dropped here and re-broadcast inside the kernel."""
    position = jnp.arange(max_len, dtype=jnp.float32)[:, None]               # (max_len, 1)
    div_term = jnp.exp(
        jnp.arange(0, d_model, 2, dtype=jnp.float32) * (-math.log(10000.0) / d_model)
    )                                                                         # (d_model/2,)
    pe = jnp.zeros((max_len, d_model), dtype=jnp.float32)
    pe = pe.at[:, 0::2].set(jnp.sin(position * div_term))
    pe = pe.at[:, 1::2].set(jnp.cos(position * div_term))
    return pe


# ---------------------------------------------------------------------------
# Pallas kernel: out = dropout(x + pe[:seq]) over one (ts, tb, D) tile
# ---------------------------------------------------------------------------
def pe_dropout_kernel(seed_ref, x_ref, pe_ref, o_ref, *,
                      p: float, train: bool,
                      block_seq: int, block_batch: int,
                      batch_total: int, d_model: int):
    # x_ref : (ts, tb, D) VMEM      pe_ref : (ts, D) VMEM
    y = x_ref[...] + pe_ref[...][:, None, :]        # broadcast pe over batch (sublane bcast)

    threshold = int(round(p * (1 << 23)))           # keep iff low-23 hash bits >= threshold
    if train and threshold > 0:
        # Stateless hash PRNG keyed on (global element index, seed): independent per
        # element and per grid tile; pure integer VPU ops hidden behind the HBM DMAs.
        shape = (block_seq, block_batch, d_model)
        s0 = pl.program_id(0) * block_seq
        b0 = pl.program_id(1) * block_batch
        s_idx = lax.broadcasted_iota(jnp.int32, shape, 0) + s0
        b_idx = lax.broadcasted_iota(jnp.int32, shape, 1) + b0
        d_idx = lax.broadcasted_iota(jnp.int32, shape, 2)
        lin = (s_idx * batch_total + b_idx) * d_model + d_idx

        seed_u = seed_ref[0].astype(jnp.uint32)
        u = lin.astype(jnp.uint32) + seed_u * jnp.uint32(0x9E3779B9)
        # lowbias32-style mix
        u = u ^ (u >> 16)
        u = u * jnp.uint32(0x7FEB352D)
        u = u ^ (u >> 15)
        u = u * jnp.uint32(0x846CA68B)
        u = u ^ (u >> 16)

        keep = (u & jnp.uint32(0x7FFFFF)) >= jnp.uint32(threshold)
        inv_keep = jnp.float32(1.0 / (1.0 - p))
        y = y * jnp.where(keep, inv_keep, jnp.float32(0.0))

    o_ref[...] = y.astype(o_ref.dtype)


# ---------------------------------------------------------------------------
# Tile selection: ~2 MiB f32 per tile, dims (8,·)-aligned or full
# ---------------------------------------------------------------------------
def _choose_tiles(S: int, B: int, D: int, target_bytes: int = 2 * 1024 * 1024):
    row_bytes = D * 4                                 # one (1, 1, D) f32 row
    if B <= 8 or B * row_bytes * min(S, 8) <= target_bytes:
        # Keep the full batch per tile; split the seq axis.
        tb = B
        ts = max(1, target_bytes // max(1, B * row_bytes))
        ts = min(ts, S)
        if S > 8:
            ts = max(8, (ts // 8) * 8)                # pe block: sublane multiple of 8
        else:
            ts = S                                    # full dim is always legal
    else:
        # Full batch too big for one tile: thin seq slice, split the batch axis.
        ts = S if S <= 8 else 8
        tb = max(1, target_bytes // max(1, ts * row_bytes))
        tb = min(tb, B)
        if B > 8:
            tb = max(8, (tb // 8) * 8)                # x block: sublane multiple of 8
        else:
            tb = B
    return int(ts), int(tb)


# ---------------------------------------------------------------------------
# Wrapper
# ---------------------------------------------------------------------------
def positional_encoding_forward(x, pe, seed: int, *, p: float = 0.1, train: bool = True):
    """x: (seq, batch, d_model) f32; pe: (max_len, d_model) f32."""
    S, B, D = x.shape
    if train:
        assert 0.0 <= p < 1.0, "dropout probability must be in [0, 1)"
    pe2d = pe[:S]                                     # (S, D) glue slice
    seed_arr = jnp.asarray([seed], dtype=jnp.int32)

    ts, tb = _choose_tiles(S, B, D)
    grid = (pl.cdiv(S, ts), pl.cdiv(B, tb))

    kernel = functools.partial(
        pe_dropout_kernel, p=float(p), train=bool(train),
        block_seq=ts, block_batch=tb, batch_total=B, d_model=D,
    )

    return pl.pallas_call(
        kernel,
        out_shape=jax.ShapeDtypeStruct(x.shape, x.dtype),
        grid_spec=pltpu.PrefetchScalarGridSpec(
            num_scalar_prefetch=1,                    # seed -> SMEM
            grid=grid,
            in_specs=[
                pl.BlockSpec((ts, tb, D), lambda i, j, seed_ref: (i, j, 0)),   # x
                pl.BlockSpec((ts, D),     lambda i, j, seed_ref: (i, 0)),      # pe (dense 2-D)
            ],
            out_specs=pl.BlockSpec((ts, tb, D), lambda i, j, seed_ref: (i, j, 0)),
        ),
        compiler_params=pltpu.CompilerParams(
            dimension_semantics=("parallel", "parallel"),   # shard tiles across TCs
        ),
    )(seed_arr, x, pe2d)
    # TODO(synk): optional bf16 I/O (cast to f32 inside the kernel) would ~halve HBM bytes.


# ---------------------------------------------------------------------------
# Main
# ---------------------------------------------------------------------------
if __name__ == "__main__":
    d_model = 128     # lane-dense (multiple of 128)
    max_len = 64
    seq_len = 16
    batch = 8         # sublane-dense
    dropout_p = 0.1

    key = jax.random.PRNGKey(0)
    x = jax.random.normal(key, (seq_len, batch, d_model), dtype=jnp.float32)
    pe = make_positional_encoding(d_model, max_len)

    # Eval-mode check (dropout disabled): must match the pure-JAX reference exactly.
    out_eval = positional_encoding_forward(x, pe, seed=0, p=dropout_p, train=False)
    jax.block_until_ready(out_eval)
    ref_eval = x + pe[:seq_len][:, None, :]
    assert jnp.allclose(out_eval, ref_eval, atol=1e-6), "eval-mode mismatch"

    # Train-mode run (dropout active, deterministic stateless in-kernel PRNG).
    out_train = positional_encoding_forward(x, pe, seed=1234, p=dropout_p, train=True)
    jax.block_until_ready(out_train)
    assert out_train.shape == x.shape and out_train.dtype == x.dtype
    # sanity: surviving elements are scaled copies of the eval output, dropped ones are 0
    ratio = jnp.where(out_train != 0, out_train / ref_eval, 1.0 / (1.0 - dropout_p))
    assert jnp.allclose(ratio, 1.0 / (1.0 - dropout_p), atol=1e-4), "dropout scaling mismatch"

    print("KERNEL_OK")
</pallas_src>

<mosaic_0001>
module attributes {stable_mosaic.version = 11 : i64} {
  func.func @pe_dropout_kernel(%arg0: i32, %arg1: i32, %arg2: memref<1xi32, #tpu.memory_space<smem>>, %arg3: memref<16x8x128xf32, #tpu.memory_space<vmem>>, %arg4: memref<16x128xf32, #tpu.memory_space<vmem>>, %arg5: memref<16x8x128xf32, #tpu.memory_space<vmem>>) attributes {dimension_semantics = [#tpu.dimension_semantics<parallel>, #tpu.dimension_semantics<parallel>], iteration_bounds = array<i64: 1, 1>, scalar_prefetch = 1 : i64, scratch_operands = 0 : i64, tpu.core_type = #tpu.core_type<tc>, window_params = [{transform_indices = @transform_0, window_bounds = array<i64: 16, 8, 128>}, {transform_indices = @transform_1, window_bounds = array<i64: 16, 128>}, {transform_indices = @transform_2, window_bounds = array<i64: 16, 8, 128>}]} {
    %c0 = arith.constant 0 : index
    %c0_0 = arith.constant 0 : index
    %c0_1 = arith.constant 0 : index
    %0 = vector.load %arg3[%c0, %c0_0, %c0_1] : memref<16x8x128xf32, #tpu.memory_space<vmem>>, vector<16x8x128xf32>
    %c0_2 = arith.constant 0 : index
    %c0_3 = arith.constant 0 : index
    %1 = vector.load %arg4[%c0_2, %c0_3] : memref<16x128xf32, #tpu.memory_space<vmem>>, vector<16x128xf32>
    %2 = vector.shape_cast %1 : vector<16x128xf32> to vector<16x1x128xf32>
    %3 = vector.broadcast %2 : vector<16x1x128xf32> to vector<16x8x128xf32>
    %4 = arith.addf %0, %3 : vector<16x8x128xf32>
    %c0_4 = arith.constant 0 : index
    %c0_5 = arith.constant 0 : index
    %c0_6 = arith.constant 0 : index
    %5 = vector.load %arg5[%c0_4, %c0_5, %c0_6] : memref<16x8x128xf32, #tpu.memory_space<vmem>>, vector<16x8x128xf32>
    tpu.vector_store %arg5[%c0_4, %c0_5, %c0_6], %4 {strides = array<i32>} : memref<16x8x128xf32, #tpu.memory_space<vmem>>, vector<16x8x128xf32>,
    return
  }
  func.func @transform_0(%arg0: i32, %arg1: i32, %arg2: memref<1xi32, #tpu.memory_space<smem>>) -> (i32, i32, i32) {
    %c0_i32 = arith.constant 0 : i32
    %c0_i32_0 = arith.constant 0 : i32
    return %arg0, %arg1, %c0_i32 : i32, i32, i32
  }
  func.func @transform_1(%arg0: i32, %arg1: i32, %arg2: memref<1xi32, #tpu.memory_space<smem>>) -> (i32, i32) {
    %c0_i32 = arith.constant 0 : i32
    %c0_i32_0 = arith.constant 0 : i32
    return %arg0, %c0_i32 : i32, i32
  }
  func.func @transform_2(%arg0: i32, %arg1: i32, %arg2: memref<1xi32, #tpu.memory_space<smem>>) -> (i32, i32, i32) {
    %c0_i32 = arith.constant 0 : i32
    %c0_i32_0 = arith.constant 0 : i32
    return %arg0, %arg1, %c0_i32 : i32, i32, i32
  }
}

</mosaic_0001>

<llo_original>
// kernel: tpu_custom_call.1
$region0: #{tpu_custom_call.1}
  #allocation0 [shape = 'u32[]', space=smem, size = 0x4, offset = 0x4, fixed_abs, tag = 'smem constant byte address 0x4 - core index']
  #allocation1 [shape = 'u32[144,128]{1,0:T(1,128)}', space=vmem, size = 0x12000, scoped, tag = 'internal scratch']
  #allocation2 [shape = 's32[1]{0}', space=sflag, size = 0x4, scoped, tag = 'scoped memory for tpu_custom_call.1']
  #allocation3 [shape = 's32[1]{0:T(128)S(6)}', space=smem, size = 0x200, scoped, tag = 'prefetched SMEM operand 0']
  %s0 = inlined_call_operand.<no memory space> [shape: s32[1], index: 0, kind: input, shape index: {}]
  %s1 = inlined_call_operand.hbm [shape: f32[16,8,128], index: 1, kind: input, shape index: {}]
  %s2 = inlined_call_operand.hbm [shape: f32[16,128], index: 2, kind: input, shape index: {}]
  %s3 = inlined_call_operand.hbm [shape: f32[16,8,128], index: 3, kind: output, shape index: {}]
  %s4 = sld [smem:[#allocation0]]
  $region26: #{tpu_custom_call.1} parent=0
    _
  %s6 = ssub.s32 1, %s4
  %s7 = scalar_select 0, %s6, %s4
  %8 = sst [smem:[#allocation3]] %s0
  $region1: #{tpu_custom_call.1} parent=0
    #allocation4 [shape = 'u8[65536]{0}', space=vmem, size = 0x10000, scoped, tag = 'input window, operand 1, single buffered']
    #allocation5 [shape = 's32[1]{0}', space=sflag, size = 0x4, scoped, tag = 'scoped memory for tpu_custom_call.1']
    #allocation6 [shape = 's32[1]{0}', space=sflag, size = 0x4, scoped, tag = 'scoped memory for tpu_custom_call.1']
    #allocation7 [shape = 'u8[8192]{0}', space=vmem, size = 0x2000, scoped, tag = 'input window, operand 2, single buffered']
    #allocation8 [shape = 's32[1]{0}', space=sflag, size = 0x4, scoped, tag = 'scoped memory for tpu_custom_call.1']
    #allocation9 [shape = 'u8[65536]{0}', space=vmem, size = 0x10000, scoped, tag = 'output window, operand 0, single buffered']
    %9 = vsyncpa [#allocation5], 0
    %10 = vsyncpa [#allocation8], 0
    %11 = vsyncpa [#allocation6], 0
    // Predicated region
    $region2: #{tpu_custom_call.1} parent=1 // pred_check
      _
    $region3: #{tpu_custom_call.1} parent=1 // pred_check_branch
      %13 = sbr.rel (0) target = $region5
    $region4: #{tpu_custom_call.1} parent=1 // pred_region
      %s15 = ssub.s32 2048, 2048
      %16 = vsyncadd [#allocation5], %s15
      %s17 = sshll.u32 [#allocation4], 4
      %s18 = int_to_ptr.vmem [resolvable:$true] %s17
      %23 = dma.hbm_to_vmem [thread:$0]  %s1, 2048, %s18, [#allocation5], 128, 128, 8
    $region5: #{tpu_custom_call.1} parent=1 // pred_fallthru
      _
    // Predicated region
    $region6: #{tpu_custom_call.1} parent=1 // pred_check
      _
    $region7: #{tpu_custom_call.1} parent=1 // pred_check_branch
      %25 = sbr.rel (0) target = $region9
    $region8: #{tpu_custom_call.1} parent=1 // pred_region
      %s27 = ssub.s32 256, 256
      %28 = vsyncadd [#allocation8], %s27
      %s29 = sshll.u32 [#allocation7], 4
      %s30 = int_to_ptr.vmem [resolvable:$true] %s29
      %35 = dma.hbm_to_vmem [thread:$0]  %s2, 256, %s30, [#allocation8], 128, 128, 8
    $region9: #{tpu_custom_call.1} parent=1 // pred_fallthru
      _
    // Predicated region
    $region10: #{tpu_custom_call.1} parent=1 // pred_check
      _
    $region11: #{tpu_custom_call.1} parent=1 // pred_check_branch
      %37 = sbr.rel (0) target = $region13
    $region12: #{tpu_custom_call.1} parent=1 // pred_region
      %38 = dma.done [#allocation5], 2048
    $region13: #{tpu_custom_call.1} parent=1 // pred_fallthru
      _
    // Predicated region
    $region14: #{tpu_custom_call.1} parent=1 // pred_check
      _
    $region15: #{tpu_custom_call.1} parent=1 // pred_check_branch
      %40 = sbr.rel (0) target = $region17
    $region16: #{tpu_custom_call.1} parent=1 // pred_region
      %41 = dma.done [#allocation8], 256
    $region17: #{tpu_custom_call.1} parent=1 // pred_fallthru
      _
    %v42 = vld [vmem:[#allocation4] sm:$0xff]
    %v43 = vld [vmem:[#allocation4 + $0x8] sm:$0xff]
    %v44 = vld [vmem:[#allocation4 + $0x10] sm:$0xff]
    %v45 = vld [vmem:[#allocation4 + $0x18] sm:$0xff]
    %v46 = vld [vmem:[#allocation4 + $0x20] sm:$0xff]
    %v47 = vld [vmem:[#allocation4 + $0x28] sm:$0xff]
    %v48 = vld [vmem:[#allocation4 + $0x30] sm:$0xff]
    %v49 = vld [vmem:[#allocation4 + $0x38] sm:$0xff]
    %v50 = vld [vmem:[#allocation4 + $0x40] sm:$0xff]
    %v51 = vld [vmem:[#allocation4 + $0x48] sm:$0xff]
    %v52 = vld [vmem:[#allocation4 + $0x50] sm:$0xff]
    %v53 = vld [vmem:[#allocation4 + $0x58] sm:$0xff]
    %v54 = vld [vmem:[#allocation4 + $0x60] sm:$0xff]
    %v55 = vld [vmem:[#allocation4 + $0x68] sm:$0xff]
    %v56 = vld [vmem:[#allocation4 + $0x70] sm:$0xff]
    %v57 = vld [vmem:[#allocation4 + $0x78] sm:$0xff]
    %v58 = vld [vmem:[#allocation7] sm:$0xff]
    %v59 = vld [vmem:[#allocation7 + $0x8] sm:$0xff]
    %v62 = vcombine.high %v58, %v58
    %v64 = vunpack.c.l.s4 1966171168
    %v65 = vunpack.c.0.s8 %v64
    %v66 = vlaneseq
    %v67 = vshrl.u32 %v66, 7
    %v68 = vsub.s32 %v65, %v67
    %v69 = vrot.slane %v58, %v68
    %v71 = vunpack.c.l.s4 1966171168
    %v72 = vunpack.c.0.s8 %v71
    %v73 = vlaneseq
    %v74 = vshrl.u32 %v73, 7
    %v75 = vsub.s32 %v72, %v74
    %v76 = vrot.slane %v62, %v75
    %v77 = vcombine.high %v69, %v69
    %v78 = vcombine.high %v76, %v76
    %v80 = vunpack.c.l.s4 1966171168
    %v81 = vunpack.c.0.s8 %v80
    %v82 = vlaneseq
    %v83 = vshrl.u32 %v82, 7
    %v84 = vsub.s32 %v81, %v83
    %v85 = vrot.slane %v69, %v84
    %v87 = vunpack.c.l.s4 1966171168
    %v88 = vunpack.c.0.s8 %v87
    %v89 = vlaneseq
    %v90 = vshrl.u32 %v89, 7
    %v91 = vsub.s32 %v88, %v90
    %v92 = vrot.slane %v76, %v91
    %v94 = vunpack.c.l.s4 1966171168
    %v95 = vunpack.c.0.s8 %v94
    %v96 = vlaneseq
    %v97 = vshrl.u32 %v96, 7
    %v98 = vsub.s32 %v95, %v97
    %v99 = vrot.slane %v77, %v98
    %v101 = vunpack.c.l.s4 1966171168
    %v102 = vunpack.c.0.s8 %v101
    %v103 = vlaneseq
    %v104 = vshrl.u32 %v103, 7
    %v105 = vsub.s32 %v102, %v104
    %v106 = vrot.slane %v78, %v105
    %v107 = vcombine.high %v85, %v85
    %v108 = vcombine.high %v92, %v92
    %v109 = vcombine.high %v99, %v99
    %v110 = vcombine.high %v106, %v106
    %v111 = vcombine.high %v59, %v59
    %v113 = vunpack.c.l.s4 1966171168
    %v114 = vunpack.c.0.s8 %v113
    %v115 = vlaneseq
    %v116 = vshrl.u32 %v115, 7
    %v117 = vsub.s32 %v114, %v116
    %v118 = vrot.slane %v59, %v117
    %v120 = vunpack.c.l.s4 1966171168
    %v121 = vunpack.c.0.s8 %v120
    %v122 = vlaneseq
    %v123 = vshrl.u32 %v122, 7
    %v124 = vsub.s32 %v121, %v123
    %v125 = vrot.slane %v111, %v124
    %v126 = vcombine.high %v118, %v118
    %v127 = vcombine.high %v125, %v125
    %v129 = vunpack.c.l.s4 1966171168
    %v130 = vunpack.c.0.s8 %v129
    %v131 = vlaneseq
    %v132 = vshrl.u32 %v131, 7
    %v133 = vsub.s32 %v130, %v132
    %v134 = vrot.slane %v118, %v133
    %v136 = vunpack.c.l.s4 1966171168
    %v137 = vunpack.c.0.s8 %v136
    %v138 = vlaneseq
    %v139 = vshrl.u32 %v138, 7
    %v140 = vsub.s32 %v137, %v139
    %v141 = vrot.slane %v125, %v140
    %v143 = vunpack.c.l.s4 1966171168
    %v144 = vunpack.c.0.s8 %v143
    %v145 = vlaneseq
    %v146 = vshrl.u32 %v145, 7
    %v147 = vsub.s32 %v144, %v146
    %v148 = vrot.slane %v126, %v147
    %v150 = vunpack.c.l.s4 1966171168
    %v151 = vunpack.c.0.s8 %v150
    %v152 = vlaneseq
    %v153 = vshrl.u32 %v152, 7
    %v154 = vsub.s32 %v151, %v153
    %v155 = vrot.slane %v127, %v154
    %v156 = vcombine.high %v134, %v134
    %v157 = vcombine.high %v141, %v141
    %v158 = vcombine.high %v148, %v148
    %v159 = vcombine.high %v155, %v155
    %v160 = vlaneseq
    %v161 = vshrl.u32 %v160, 7
    %v162 = vsub.s32 0, %v161
    %v163 = vrot.slane %v85, %v162
    %v164 = vlaneseq
    %v165 = vshrl.u32 %v164, 7
    %v166 = vsub.s32 0, %v165
    %v167 = vrot.slane %v99, %v166
    %v168 = vlaneseq
    %v169 = vshrl.u32 %v168, 7
    %v170 = vsub.s32 0, %v169
    %v171 = vrot.slane %v107, %v170
    %v172 = vlaneseq
    %v173 = vshrl.u32 %v172, 7
    %v174 = vsub.s32 0, %v173
    %v175 = vrot.slane %v109, %v174
    %v176 = vlaneseq
    %v177 = vshrl.u32 %v176, 7
    %v178 = vsub.s32 0, %v177
    %v179 = vrot.slane %v92, %v178
    %v180 = vlaneseq
    %v181 = vshrl.u32 %v180, 7
    %v182 = vsub.s32 0, %v181
    %v183 = vrot.slane %v106, %v182
    %v184 = vlaneseq
    %v185 = vshrl.u32 %v184, 7
    %v186 = vsub.s32 0, %v185
    %v187 = vrot.slane %v108, %v186
    %v188 = vlaneseq
    %v189 = vshrl.u32 %v188, 7
    %v190 = vsub.s32 0, %v189
    %v191 = vrot.slane %v110, %v190
    %v192 = vlaneseq
    %v193 = vshrl.u32 %v192, 7
    %v194 = vsub.s32 0, %v193
    %v195 = vrot.slane %v134, %v194
    %v196 = vlaneseq
    %v197 = vshrl.u32 %v196, 7
    %v198 = vsub.s32 0, %v197
    %v199 = vrot.slane %v148, %v198
    %v200 = vlaneseq
    %v201 = vshrl.u32 %v200, 7
    %v202 = vsub.s32 0, %v201
    %v203 = vrot.slane %v156, %v202
    %v204 = vlaneseq
    %v205 = vshrl.u32 %v204, 7
    %v206 = vsub.s32 0, %v205
    %v207 = vrot.slane %v158, %v206
    %v208 = vlaneseq
    %v209 = vshrl.u32 %v208, 7
    %v210 = vsub.s32 0, %v209
    %v211 = vrot.slane %v141, %v210
    %v212 = vlaneseq
    %v213 = vshrl.u32 %v212, 7
    %v214 = vsub.s32 0, %v213
    %v215 = vrot.slane %v155, %v214
    %v216 = vlaneseq
    %v217 = vshrl.u32 %v216, 7
    %v218 = vsub.s32 0, %v217
    %v219 = vrot.slane %v157, %v218
    %v220 = vlaneseq
    %v221 = vshrl.u32 %v220, 7
    %v222 = vsub.s32 0, %v221
    %v223 = vrot.slane %v159, %v222
    %v240 = vadd.f32 %v42, %v163
    %v241 = vadd.f32 %v43, %v167
    %v242 = vadd.f32 %v44, %v171
    %v243 = vadd.f32 %v45, %v175
    %v244 = vadd.f32 %v46, %v179
    %v245 = vadd.f32 %v47, %v183
    %v246 = vadd.f32 %v48, %v187
    %v247 = vadd.f32 %v49, %v191
    %v248 = vadd.f32 %v50, %v195
    %v249 = vadd.f32 %v51, %v199
    %v250 = vadd.f32 %v52, %v203
    %v251 = vadd.f32 %v53, %v207
    %v252 = vadd.f32 %v54, %v211
    %v253 = vadd.f32 %v55, %v215
    %v254 = vadd.f32 %v56, %v219
    %v255 = vadd.f32 %v57, %v223
    %256 = vst [vmem:[#allocation9] sm:$0xff] %v240
    %257 = vst [vmem:[#allocation9 + $0x8] sm:$0xff] %v241
    %258 = vst [vmem:[#allocation9 + $0x10] sm:$0xff] %v242
    %259 = vst [vmem:[#allocation9 + $0x18] sm:$0xff] %v243
    %260 = vst [vmem:[#allocation9 + $0x20] sm:$0xff] %v244
    %261 = vst [vmem:[#allocation9 + $0x28] sm:$0xff] %v245
    %262 = vst [vmem:[#allocation9 + $0x30] sm:$0xff] %v246
    %263 = vst [vmem:[#allocation9 + $0x38] sm:$0xff] %v247
    %264 = vst [vmem:[#allocation9 + $0x40] sm:$0xff] %v248
    %265 = vst [vmem:[#allocation9 + $0x48] sm:$0xff] %v249
    %266 = vst [vmem:[#allocation9 + $0x50] sm:$0xff] %v250
    %267 = vst [vmem:[#allocation9 + $0x58] sm:$0xff] %v251
    %268 = vst [vmem:[#allocation9 + $0x60] sm:$0xff] %v252
    %269 = vst [vmem:[#allocation9 + $0x68] sm:$0xff] %v253
    %270 = vst [vmem:[#allocation9 + $0x70] sm:$0xff] %v254
    %271 = vst [vmem:[#allocation9 + $0x78] sm:$0xff] %v255
    // Predicated region
    $region18: #{tpu_custom_call.1} parent=1 // pred_check
      _
    $region19: #{tpu_custom_call.1} parent=1 // pred_check_branch
      %273 = sbr.rel (0) target = $region21
    $region20: #{tpu_custom_call.1} parent=1 // pred_region
      %s275 = ssub.s32 2048, 2048
      %276 = vsyncadd [#allocation6], %s275
      %s277 = sshll.u32 [#allocation9], 4
      %s278 = int_to_ptr.vmem [resolvable:$true] %s277
      %283 = dma.vmem_to_hbm [thread:$0]  %s278, 2048, %s3, [#allocation6], 128, 128, 8
    $region21: #{tpu_custom_call.1} parent=1 // pred_fallthru
      _
    // Predicated region
    $region22: #{tpu_custom_call.1} parent=1 // pred_check
      _
    $region23: #{tpu_custom_call.1} parent=1 // pred_check_branch
      %285 = sbr.rel (0) target = $region25
    $region24: #{tpu_custom_call.1} parent=1 // pred_region
      %286 = dma.done [#allocation6], 2048
    $region25: #{tpu_custom_call.1} parent=1 // pred_fallthru
      _
    %287 = vsyncpa [#allocation5], 1
    %288 = vsyncpa [#allocation8], 1
    %289 = vsyncpa [#allocation6], 1

</llo_original>
